<compile_context>
chip_gen: v5e
topology: v5e:2x2
jax: 0.10.0
libtpu: 0.0.40
codegen_flags: <defaults>
</compile_context>

<pallas_src>
import functools

import jax
import jax.numpy as jnp
from jax.experimental import pallas as pl
from jax.experimental.pallas import tpu as pltpu

_EPS = 1e-6      # matches torch.nn.functional.pairwise_distance default eps
_NSPLIT = 2      # leading "parallel" grid axis: 2 TCs on v7x, harmless on v5e/v6e


def _contrastive_kernel(x1_ref, x2_ref, out_ref, acc_ref, *,
                        label, margin, rows_total, tile_rows,
                        tiles_per_split, flat, needs_mask):
    # x1_ref/x2_ref: (tile_rows, cols) VMEM tiles (native dtype, up-cast here).
    # out_ref: (1, 1, 1) f32 per-split partial sum (written once, last k step).
    # acc_ref: (1, 1) f32 VMEM scratch accumulator (per-core, persists over k).
    k = pl.program_id(1)

    @pl.when(k == 0)
    def _init():
        acc_ref[...] = jnp.zeros_like(acc_ref)

    x1 = x1_ref[...].astype(jnp.float32)
    x2 = x2_ref[...].astype(jnp.float32)
    diff = x1 - x2 + _EPS
    sq = diff * diff

    # Logical tile index (un-clamped); rows past rows_total cover both the
    # remainder of a partial last tile and the duplicate tile of the 2-way split.
    tile_idx = pl.program_id(0) * tiles_per_split + k
    row_start = tile_idx * tile_rows

    if flat:
        # label == 0:  mean_i d_i^2 == (1/B) * sum over ALL elements of diff^2,
        # so no per-row reduction is needed -> fully lane-dense streaming sum.
        if needs_mask:
            rows = row_start + jax.lax.broadcasted_iota(jnp.int32, sq.shape, 0)
            sq = jnp.where(rows < rows_total, sq, 0.0)
        acc_ref[...] += jnp.sum(sq, keepdims=True)
    else:
        d2 = jnp.sum(sq, axis=-1, keepdims=True)            # (tile_rows, 1) = d^2
        if label == 1.0:
            per_row = jnp.square(jnp.maximum(margin - jnp.sqrt(d2), 0.0))
        else:
            dist = jnp.sqrt(d2)
            per_row = ((1.0 - label) * d2 +
                       label * jnp.square(jnp.maximum(margin - dist, 0.0)))
        if needs_mask:
            rows = row_start + jax.lax.broadcasted_iota(jnp.int32, per_row.shape, 0)
            per_row = jnp.where(rows < rows_total, per_row, 0.0)
        acc_ref[...] += jnp.sum(per_row, keepdims=True)

    @pl.when(k == tiles_per_split - 1)
    def _finalize():
        out_ref[...] = acc_ref[...].reshape((1, 1, 1))


def _vmem_limit_bytes():
    """Generation-aware scoped-VMEM limit (never size against 128 MiB on v7x)."""
    try:
        info = pltpu.get_tpu_info()
        cap = int(getattr(info, "vmem_capacity_bytes", 64 << 20))
    except Exception:
        cap = 64 << 20                      # conservative: v7x physical VMEM
    return max(32 << 20, min(int(0.75 * cap), 96 << 20))


def _sublane_multiple(itemsize):
    # f32 -> 8, bf16 -> 16, int8/fp8 -> 32 (sub-32-bit dtypes pack along sublanes).
    return max(8, 32 // max(1, int(itemsize)))


def _pick_tile_rows(rows, cols, itemsize, vmem_limit):
    """Biggest tile that fits: 2 inputs x 2 buffers + ~4 f32 temps, 15% headroom."""
    cols_pad = ((cols + 127) // 128) * 128
    per_row = 4 * cols_pad * itemsize + 4 * cols_pad * 4
    sub = _sublane_multiple(itemsize)
    r = int(0.85 * vmem_limit) // per_row
    r = max(sub, (r // sub) * sub)
    return min(r, rows)


def contrastive_loss(output1, output2, label=0.0, margin=2.0, *, tile_rows=None):
    """Pallas TPU implementation of ContrastiveLoss.forward (scalar label)."""
    assert output1.shape == output2.shape and output1.ndim == 2
    B, D = map(int, output1.shape)
    # TODO(synk): per-sample label tensors (shape (B,)) would need a streamed
    # label tile; this wrapper bakes a single static Python-scalar label.
    label = float(label)
    margin = float(margin)
    itemsize = jnp.dtype(output1.dtype).itemsize

    flat = (label == 0.0)
    x1, x2 = output1, output2
    if flat and D % 128 != 0 and (B * D) % 128 == 0:
        # Lane-dense fold: view (B, D) as (B*D/128, 128); row-major layout plumbing.
        x1 = x1.reshape(B * D // 128, 128)
        x2 = x2.reshape(B * D // 128, 128)
    # TODO(synk): lane-dense folding for the hinge (label != 0) branch with D < 128
    # needs an in-kernel grouped lane reduction; it stays on the plain (tile, D) layout.
    rows, cols = map(int, x1.shape)

    vmem_limit = _vmem_limit_bytes()
    if tile_rows is None:
        tile_rows = _pick_tile_rows(rows, cols, itemsize, vmem_limit)
    else:
        sub = _sublane_multiple(itemsize)
        tile_rows = min(int(tile_rows), rows)
        if tile_rows < rows:
            tile_rows = max(sub, (tile_rows // sub) * sub)

    num_tiles = pl.cdiv(rows, tile_rows)
    tiles_per_split = pl.cdiv(num_tiles, _NSPLIT)
    needs_mask = (rows % tile_rows != 0) or (_NSPLIT * tiles_per_split != num_tiles)

    kernel = functools.partial(
        _contrastive_kernel, label=label, margin=margin, rows_total=rows,
        tile_rows=tile_rows, tiles_per_split=tiles_per_split,
        flat=flat, needs_mask=needs_mask)

    def in_map(c, k):
        # Clamp the duplicate tile of an odd split; its contribution is masked.
        return (jnp.minimum(c * tiles_per_split + k, num_tiles - 1), 0)

    cost = pl.CostEstimate(
        flops=int(5 * B * D),
        transcendentals=0 if flat else int(B),
        bytes_accessed=int(2 * B * D * itemsize + _NSPLIT * 4),
    )

    partials = pl.pallas_call(
        kernel,
        out_shape=jax.ShapeDtypeStruct((_NSPLIT, 1, 1), jnp.float32),
        grid_spec=pltpu.PrefetchScalarGridSpec(
            num_scalar_prefetch=0,
            grid=(_NSPLIT, tiles_per_split),
            in_specs=[
                pl.BlockSpec((tile_rows, cols), in_map),   # output1 tile
                pl.BlockSpec((tile_rows, cols), in_map),   # output2 tile
            ],
            out_specs=pl.BlockSpec((1, 1, 1), lambda c, k: (c, 0, 0)),
            scratch_shapes=[pltpu.VMEM((1, 1), jnp.float32)],   # per-core accumulator
        ),
        compiler_params=pltpu.CompilerParams(
            dimension_semantics=("parallel", "arbitrary"),      # cores x reduction
            vmem_limit_bytes=int(vmem_limit),
        ),
        cost_estimate=cost,
    )(x1, x2)
    return jnp.sum(partials) * (1.0 / B)


def _reference_loss(x1, x2, label=0.0, margin=2.0):
    # Pure-JAX reference of the torch module (sanity check).
    x1 = x1.astype(jnp.float32)
    x2 = x2.astype(jnp.float32)
    d = jnp.sqrt(jnp.sum(jnp.square(x1 - x2 + _EPS), axis=-1))
    return jnp.mean((1.0 - label) * d ** 2
                    + label * jnp.clip(margin - d, 0.0, None) ** 2)


if __name__ == "__main__":
    key = jax.random.PRNGKey(0)
    k1, k2, k3, k4 = jax.random.split(key, 4)

    # Small embedding pairs consistent with pairwise_distance usage.
    B, D = 8, 32
    a = jax.random.normal(k1, (B, D), dtype=jnp.float32)
    b = jax.random.normal(k2, (B, D), dtype=jnp.float32)

    checks = []
    for lab in (0.0, 1.0, 0.25):          # flat path, hinge-only path, mixed path
        checks.append((contrastive_loss(a, b, label=lab, margin=2.0),
                       _reference_loss(a, b, lab, 2.0), 1e-5))

    # Multi-tile hinge path with remainder + duplicate-tile masking (3 tiles, grid (2,2)).
    B2 = 20
    c = jax.random.normal(k3, (B2, D), dtype=jnp.float32)
    d = jax.random.normal(k4, (B2, D), dtype=jnp.float32)
    checks.append((contrastive_loss(c, d, label=1.0, margin=2.0, tile_rows=8),
                   _reference_loss(c, d, 1.0, 2.0), 1e-5))

    # Lane-dense flat path (label=0): (160,32) folds to (40,128); tile=8 -> 5 tiles, grid (2,3).
    B3 = 160
    e = jax.random.normal(k1, (B3, D), dtype=jnp.float32)
    f = jax.random.normal(k2, (B3, D), dtype=jnp.float32)
    checks.append((contrastive_loss(e, f, label=0.0, margin=2.0, tile_rows=8),
                   _reference_loss(e, f, 0.0, 2.0), 1e-5))

    # bf16 inputs streamed natively (half HBM bytes), up-cast inside the kernel.
    a16, b16 = a.astype(jnp.bfloat16), b.astype(jnp.bfloat16)
    for lab in (0.0, 1.0):
        checks.append((contrastive_loss(a16, b16, label=lab, margin=2.0),
                       _reference_loss(a16, b16, lab, 2.0), 2e-3))

    got_vals = jax.block_until_ready([g for g, _, _ in checks])
    for val, (_, ref, tol) in zip(got_vals, checks):
        assert jnp.allclose(val, ref, rtol=tol, atol=tol), (float(val), float(ref))
    print("KERNEL_OK")
</pallas_src>

<mosaic_0001>
module attributes {stable_mosaic.version = 11 : i64} {
  func.func @_contrastive_kernel(%arg0: i32, %arg1: i32, %arg2: memref<2x128xf32, #tpu.memory_space<vmem>>, %arg3: memref<2x128xf32, #tpu.memory_space<vmem>>, %arg4: memref<1x1x1xf32, #tpu.memory_space<vmem>>, %arg5: memref<1x1xf32, #tpu.memory_space<vmem>>) attributes {dimension_semantics = [#tpu.dimension_semantics<parallel>, #tpu.dimension_semantics<arbitrary>], iteration_bounds = array<i64: 2, 1>, scalar_prefetch = 0 : i64, scratch_operands = 1 : i64, tpu.core_type = #tpu.core_type<tc>, window_params = [{transform_indices = @transform_0, window_bounds = array<i64: 2, 128>}, {transform_indices = @transform_1, window_bounds = array<i64: 2, 128>}, {transform_indices = @transform_2, window_bounds = array<i64: 1, 1, 1>}]} {
    %c0_i32 = arith.constant 0 : i32
    %0 = arith.cmpi eq, %arg1, %c0_i32 : i32
    %1 = arith.extui %0 : i1 to i32
    %c0_i32_0 = arith.constant 0 : i32
    %2 = arith.cmpi ne, %1, %c0_i32_0 : i32
    scf.if %2 {
      %cst_13 = arith.constant 0.000000e+00 : f32
      %30 = vector.broadcast %cst_13 : f32 to vector<1x1xf32>
      %c0_14 = arith.constant 0 : index
      %c0_15 = arith.constant 0 : index
      %31 = vector.load %arg5[%c0_14, %c0_15] : memref<1x1xf32, #tpu.memory_space<vmem>>, vector<1x1xf32>
      tpu.vector_store %arg5[%c0_14, %c0_15], %30 {strides = array<i32>} : memref<1x1xf32, #tpu.memory_space<vmem>>, vector<1x1xf32>,
    } else {
    }
    %c0 = arith.constant 0 : index
    %c0_1 = arith.constant 0 : index
    %3 = vector.load %arg2[%c0, %c0_1] : memref<2x128xf32, #tpu.memory_space<vmem>>, vector<2x128xf32>
    %c0_2 = arith.constant 0 : index
    %c0_3 = arith.constant 0 : index
    %4 = vector.load %arg3[%c0_2, %c0_3] : memref<2x128xf32, #tpu.memory_space<vmem>>, vector<2x128xf32>
    %5 = arith.subf %3, %4 : vector<2x128xf32>
    %cst = arith.constant 9.99999997E-7 : f32
    %6 = vector.broadcast %cst : f32 to vector<2x128xf32>
    %7 = arith.addf %5, %6 : vector<2x128xf32>
    %8 = arith.mulf %7, %7 : vector<2x128xf32>
    %c1_i32 = arith.constant 1 : i32
    %9 = arith.muli %arg0, %c1_i32 : i32
    %10 = arith.addi %9, %arg1 : i32
    %c2_i32 = arith.constant 2 : i32
    %11 = arith.muli %10, %c2_i32 : i32
    %12 = tpu.iota {dimensions = array<i32: 0>} : vector<2x128xi32>
    %13 = vector.broadcast %11 : i32 to vector<2x128xi32>
    %14 = arith.addi %13, %12 : vector<2x128xi32>
    %c2_i32_4 = arith.constant 2 : i32
    %15 = vector.broadcast %c2_i32_4 : i32 to vector<2x128xi32>
    %16 = arith.cmpi slt, %14, %15 : vector<2x128xi32>
    %cst_5 = arith.constant 0.000000e+00 : f32
    %17 = vector.broadcast %cst_5 : f32 to vector<2x128xf32>
    %18 = arith.select %16, %8, %17 : vector<2x128xi1>, vector<2x128xf32>
    %c0_6 = arith.constant 0 : index
    %c0_7 = arith.constant 0 : index
    %19 = vector.load %arg5[%c0_6, %c0_7] : memref<1x1xf32, #tpu.memory_space<vmem>>, vector<1x1xf32>
    %20 = vector.shape_cast %18 : vector<2x128xf32> to vector<1x2x128xf32>
    %cst_8 = arith.constant dense<0.000000e+00> : vector<1xf32>
    %21 = vector.multi_reduction <add>, %20, %cst_8 [1, 2] : vector<1x2x128xf32> to vector<1xf32>
    %22 = vector.shape_cast %21 : vector<1xf32> to vector<1x1x1xf32>
    %23 = vector.extract %22[0, 0, 0] : f32 from vector<1x1x1xf32>
    %24 = vector.broadcast %23 : f32 to vector<1x1xf32>
    %25 = arith.addf %19, %24 : vector<1x1xf32>
    %c0_9 = arith.constant 0 : index
    %c0_10 = arith.constant 0 : index
    %26 = vector.load %arg5[%c0_9, %c0_10] : memref<1x1xf32, #tpu.memory_space<vmem>>, vector<1x1xf32>
    tpu.vector_store %arg5[%c0_9, %c0_10], %25 {strides = array<i32>} : memref<1x1xf32, #tpu.memory_space<vmem>>, vector<1x1xf32>,
    %c0_i32_11 = arith.constant 0 : i32
    %27 = arith.cmpi eq, %arg1, %c0_i32_11 : i32
    %28 = arith.extui %27 : i1 to i32
    %c0_i32_12 = arith.constant 0 : i32
    %29 = arith.cmpi ne, %28, %c0_i32_12 : i32
    scf.if %29 {
      %c0_13 = arith.constant 0 : index
      %c0_14 = arith.constant 0 : index
      %30 = vector.load %arg5[%c0_13, %c0_14] : memref<1x1xf32, #tpu.memory_space<vmem>>, vector<1x1xf32>
      %31 = vector.shape_cast %30 : vector<1x1xf32> to vector<1x1x1xf32>
      %c0_15 = arith.constant 0 : index
      %c0_16 = arith.constant 0 : index
      %c0_17 = arith.constant 0 : index
      %32 = vector.load %arg4[%c0_15, %c0_16, %c0_17] : memref<1x1x1xf32, #tpu.memory_space<vmem>>, vector<1x1x1xf32>
      tpu.vector_store %arg4[%c0_15, %c0_16, %c0_17], %31 {strides = array<i32>} : memref<1x1x1xf32, #tpu.memory_space<vmem>>, vector<1x1x1xf32>,
    } else {
    }
    return
  }
  func.func @transform_0(%arg0: i32, %arg1: i32) -> (i32, i32) {
    %c1_i32 = arith.constant 1 : i32
    %0 = arith.muli %arg0, %c1_i32 : i32
    %1 = arith.addi %0, %arg1 : i32
    %c0_i32 = arith.constant 0 : i32
    %2 = arith.minsi %1, %c0_i32 : i32
    %c0_i32_0 = arith.constant 0 : i32
    %c0_i32_1 = arith.constant 0 : i32
    return %2, %c0_i32_0 : i32, i32
  }
  func.func @transform_1(%arg0: i32, %arg1: i32) -> (i32, i32) {
    %c1_i32 = arith.constant 1 : i32
    %0 = arith.muli %arg0, %c1_i32 : i32
    %1 = arith.addi %0, %arg1 : i32
    %c0_i32 = arith.constant 0 : i32
    %2 = arith.minsi %1, %c0_i32 : i32
    %c0_i32_0 = arith.constant 0 : i32
    %c0_i32_1 = arith.constant 0 : i32
    return %2, %c0_i32_0 : i32, i32
  }
  func.func @transform_2(%arg0: i32, %arg1: i32) -> (i32, i32, i32) {
    %c0_i32 = arith.constant 0 : i32
    %c0_i32_0 = arith.constant 0 : i32
    %c0_i32_1 = arith.constant 0 : i32
    return %arg0, %c0_i32, %c0_i32_0 : i32, i32, i32
  }
}

</mosaic_0001>

<llo_original>
// kernel: tpu_custom_call.1
$region0: #{tpu_custom_call.1}
  #allocation0 [shape = 'u32[]', space=smem, size = 0x4, offset = 0x4, fixed_abs, tag = 'smem constant byte address 0x4 - core index']
  #allocation1 [shape = 'u32[72,128]{1,0:T(1,128)}', space=vmem, size = 0x9000, scoped, tag = 'internal scratch']
  #allocation2 [shape = 'f32[1,1]{1,0:T(1,128)}', space=vmem, size = 0x200, scoped, tag = 'scratch operand']
  %s0 = inlined_call_operand.hbm [shape: f32[2,128], index: 0, kind: input, shape index: {}]
  %s1 = inlined_call_operand.hbm [shape: f32[2,128], index: 1, kind: input, shape index: {}]
  %s2 = inlined_call_operand.vmem [shape: f32[2,1,1], index: 2, kind: output, shape index: {}]
  %s3 = sld [smem:[#allocation0]]
  $region57: #{tpu_custom_call.1} parent=0
    _
  %s5 = ssub.s32 1, %s3
  %s6 = scalar_select 0, %s5, %s3
  $region1: #{tpu_custom_call.1} parent=0
    #allocation3 [shape = 'u8[2048]{0}', space=vmem, size = 0x800, scoped, tag = 'input window, operand 0']
    #allocation4 [shape = 's32[2]{0}', space=sflag, size = 0x8, scoped, tag = 'scoped memory for tpu_custom_call.1']
    #allocation5 [shape = 'u8[2048]{0}', space=vmem, size = 0x800, scoped, tag = 'input window, operand 1']
    #allocation6 [shape = 's32[2]{0}', space=sflag, size = 0x8, scoped, tag = 'scoped memory for tpu_custom_call.1']
    %7 = vsyncpa [#allocation4], 0
    %s8 = scalar_lea.sflag [#allocation4], 1
    %9 = vsyncpa %s8, 0
    %10 = vsyncpa [#allocation6], 0
    %s11 = scalar_lea.sflag [#allocation6], 1
    %12 = vsyncpa %s11, 0
    loop: start=0, step=1, limit=4
    $region2: #{tpu_custom_call.1} parent=1 // loop_pre_header
      _
    $region3: #{tpu_custom_call.1} parent=1 // loop_header
      %s14 = sphi 0, %s18
      %p15 = scmp.ge.s32.totalorder %s14, 4
      %s21 = sphi 0, %s33
      %s22 = sphi 0, %s29
      %s23 = sphi 0, %s21
      %s24 = sphi 0, %s22
      %s25 = sphi 0, %s23
      %s26 = sphi 0, %s24
      %s42 = sphi 0, %s44
      %s45 = sphi 0, %s42
      %s46 = sphi 0, %s45
      %s62 = sphi 0, %s46
      %s74 = sphi 0, %s76
      %s77 = sphi 0, %s74
      %s78 = sphi 0, %s77
      %s94 = sphi 0, %s78
      %s100 = sphi 0, %s102
      %s103 = sphi 0, %s100
      %s104 = sphi 0, %s103
      %s120 = sphi 0, %s104
    $region4: #{tpu_custom_call.1} parent=1 // loop_header_branch
      %17 = sbr.rel (%p15) target = $region8
    $region5: #{tpu_custom_call.1} parent=1 // loop_body
      %s19 = ssub.s32 %s14, 1
      %s20 = ssub.s32 %s14, 2
      %s27 = sadd.s32 1, %s22
      %p28 = scmp.ge.s32.totalorder %s27, 1
      %s29 = scalar_select %p28, 0, %s27
      %s30 = sadd.s32 1, %s21
      %s31 = scalar_select %p28, %s30, %s21
      %p32 = scmp.ge.s32.totalorder %s31, 2
      %s33 = scalar_select %p32, 0, %s31
      %s34 = sadd.s32 %s21, %s22
      %p35 = scmp.lt.s32.totalorder %s34, 0
      %s36 = scalar_select %p35, %s34, 0
      %s37 = sadd.s32 %s33, %s29
      %p38 = scmp.lt.s32.totalorder %s37, 0
      %s39 = scalar_select %p38, %s37, 0
      %s40 = ssub.s32 %s36, %s39
      %p41 = scmp.eq.s32.totalorder %s40, 0
      %s43 = sadd.s32 %s42, 1
      %s44 = scalar_select %p41, %s42, %s43
      %p47 = pneg %p41
      %p48 = scmp.eq.s32.totalorder %s14, 1
      %p49 = por %p47, %p48
      %p50 = scmp.ne.s32.totalorder %s42, %s45
      %p51 = scmp.eq.s32.totalorder %s14, 0
      %p52 = por %p50, %p51
      %p53 = scmp.ne.s32.totalorder %s42, %s45
      %p54 = scmp.eq.s32.totalorder %s19, 1
      %p55 = por %p53, %p54
      %p56 = scmp.ne.s32.totalorder %s45, %s46
      %p57 = scmp.eq.s32.totalorder %s19, 0
      %p58 = por %p56, %p57
      %p59 = scmp.ne.s32.totalorder %s45, %s46
      %p60 = scmp.eq.s32.totalorder %s20, 1
      %p61 = por %p59, %p60
      %p63 = scmp.ne.s32.totalorder %s46, %s62
      %p64 = scmp.eq.s32.totalorder %s20, 0
      %p65 = por %p63, %p64
      %s66 = sadd.s32 %s21, %s22
      %p67 = scmp.lt.s32.totalorder %s66, 0
      %s68 = scalar_select %p67, %s66, 0
      %s69 = sadd.s32 %s33, %s29
      %p70 = scmp.lt.s32.totalorder %s69, 0
      %s71 = scalar_select %p70, %s69, 0
      %s72 = ssub.s32 %s68, %s71
      %p73 = scmp.eq.s32.totalorder %s72, 0
      %s75 = sadd.s32 %s74, 1
      %s76 = scalar_select %p73, %s74, %s75
      %p79 = pneg %p73
      %p80 = scmp.eq.s32.totalorder %s14, 1
      %p81 = por %p79, %p80
      %p82 = scmp.ne.s32.totalorder %s74, %s77
      %p83 = scmp.eq.s32.totalorder %s14, 0
      %p84 = por %p82, %p83
      %p85 = scmp.ne.s32.totalorder %s74, %s77
      %p86 = scmp.eq.s32.totalorder %s19, 1
      %p87 = por %p85, %p86
      %p88 = scmp.ne.s32.totalorder %s77, %s78
      %p89 = scmp.eq.s32.totalorder %s19, 0
      %p90 = por %p88, %p89
      %p91 = scmp.ne.s32.totalorder %s77, %s78
      %p92 = scmp.eq.s32.totalorder %s20, 1
      %p93 = por %p91, %p92
      %p95 = scmp.ne.s32.totalorder %s78, %s94
      %p96 = scmp.eq.s32.totalorder %s20, 0
      %p97 = por %p95, %p96
      %s98 = ssub.s32 %s21, %s33
      %p99 = scmp.eq.s32.totalorder %s98, 0
      %s101 = sadd.s32 %s100, 1
      %s102 = scalar_select %p99, %s100, %s101
      %p105 = pneg %p99
      %p106 = scmp.eq.s32.totalorder %s14, 1
      %p107 = por %p105, %p106
      %p108 = scmp.ne.s32.totalorder %s100, %s103
      %p109 = scmp.eq.s32.totalorder %s14, 0
      %p110 = por %p108, %p109
      %p111 = scmp.ne.s32.totalorder %s100, %s103
      %p112 = scmp.eq.s32.totalorder %s19, 1
      %p113 = por %p111, %p112
      %p114 = scmp.ne.s32.totalorder %s103, %s104
      %p115 = scmp.eq.s32.totalorder %s19, 0
      %p116 = por %p114, %p115
      %p117 = scmp.ne.s32.totalorder %s103, %s104
      %p118 = scmp.eq.s32.totalorder %s20, 1
      %p119 = por %p117, %p118
      %p121 = scmp.ne.s32.totalorder %s104, %s120
      %p122 = scmp.eq.s32.totalorder %s20, 0
      %p123 = por %p121, %p122
      %p124 = scmp.le.s32.totalorder 1, %s14
      %p125 = scmp.lt.s32.totalorder %s14, 3
      %p126 = pnand %p124, %p125
      %p127 = pneg %p126
      // Predicated region
      $region9: #{tpu_custom_call.1} parent=5 // pred_check
        _
      $region10: #{tpu_custom_call.1} parent=5 // pred_check_branch
        %129 = sbr.rel (%p126) target = $region12
      $region11: #{tpu_custom_call.1} parent=5 // pred_region
        %s130 = ssub.s32 %s14, 1
      $region12: #{tpu_custom_call.1} parent=5 // pred_fallthru
        _
      %p131 = scmp.lt.s32.totalorder %s14, 2
      // Predicated region
      $region13: #{tpu_custom_call.1} parent=5 // pred_check
        %p132 = pneg %p131
      $region14: #{tpu_custom_call.1} parent=5 // pred_check_branch
        %134 = sbr.rel (%p132) target = $region16
      $region15: #{tpu_custom_call.1} parent=5 // pred_region
        // Predicated region
        $region17: #{tpu_custom_call.1} parent=15 // pred_check
          %p135 = pneg %p52
        $region18: #{tpu_custom_call.1} parent=15 // pred_check_branch
          %137 = sbr.rel (%p135) target = $region20
        $region19: #{tpu_custom_call.1} parent=15 // pred_region
          %s138 = sand.u32 %s42, 1
          %s139 = scalar_lea.sflag [#allocation4], %s138
          %s140 = sand.u32 %s42, 1
          %s141 = smul.addr %s140, 2
          %s142 = scalar_lea.vmem [#allocation3], %s141
          %s143 = sadd.s32 %s21, %s22
          %p144 = scmp.lt.s32.totalorder %s143, 0
          %s145 = scalar_select %p144, %s143, 0
          %147 = vsyncadd %s139, 0
          %s148 = smul.addr %s145, 2
          %s149 = scalar_lea.hbm %s0, %s148
          %s151 = sshll.u32 %s149, 4
          %s152 = int_to_ptr.hbm [resolvable:$true] %s151
          %s153 = sshll.u32 %s142, 4
          %s154 = int_to_ptr.vmem [resolvable:$true] %s153
          %156 = dma.hbm_to_vmem [thread:$0]  %s152, 32, %s154, %s139
        $region20: #{tpu_custom_call.1} parent=15 // pred_fallthru
          _
        // Predicated region
        $region21: #{tpu_custom_call.1} parent=15 // pred_check
          %p157 = pneg %p84
        $region22: #{tpu_custom_call.1} parent=15 // pred_check_branch
          %159 = sbr.rel (%p157) target = $region24
        $region23: #{tpu_custom_call.1} parent=15 // pred_region
          %s160 = sand.u32 %s74, 1
          %s161 = scalar_lea.sflag [#allocation6], %s160
          %s162 = sand.u32 %s74, 1
          %s163 = smul.addr %s162, 2
          %s164 = scalar_lea.vmem [#allocation5], %s163
          %s165 = sadd.s32 %s21, %s22
          %p166 = scmp.lt.s32.totalorder %s165, 0
          %s167 = scalar_select %p166, %s165, 0
          %169 = vsyncadd %s161, 0
          %s170 = smul.addr %s167, 2
          %s171 = scalar_lea.hbm %s1, %s170
          %s173 = sshll.u32 %s171, 4
          %s174 = int_to_ptr.hbm [resolvable:$true] %s173
          %s175 = sshll.u32 %s164, 4
          %s176 = int_to_ptr.vmem [resolvable:$true] %s175
          %178 = dma.hbm_to_vmem [thread:$0]  %s174, 32, %s176, %s161
        $region24: #{tpu_custom_call.1} parent=15 // pred_fallthru
          _
      $region16: #{tpu_custom_call.1} parent=5 // pred_fallthru
        _
      %p179 = scmp.le.s32.totalorder 1, %s14
      %p180 = scmp.lt.s32.totalorder %s14, 3
      %p181 = pnand %p179, %p180
      %p182 = pneg %p181
      // Predicated region
      $region25: #{tpu_custom_call.1} parent=5 // pred_check
        _
      $region26: #{tpu_custom_call.1} parent=5 // pred_check_branch
        %184 = sbr.rel (%p181) target = $region28
      $region27: #{tpu_custom_call.1} parent=5 // pred_region
        %s185 = ssub.s32 %s14, 1
        %s186 = sand.u32 %s45, 1
        %s187 = scalar_lea.sflag [#allocation4], %s186
        %s188 = sand.u32 %s45, 1
        %s189 = smul.addr %s188, 2
        %s190 = scalar_lea.vmem [#allocation3], %s189
        // Predicated region
        $region29: #{tpu_custom_call.1} parent=27 // pred_check
          %p191 = pneg %p58
        $region30: #{tpu_custom_call.1} parent=27 // pred_check_branch
          %193 = sbr.rel (%p191) target = $region32
        $region31: #{tpu_custom_call.1} parent=27 // pred_region
          %195 = dma.done %s187, 32
        $region32: #{tpu_custom_call.1} parent=27 // pred_fallthru
          _
        %s196 = sand.u32 %s77, 1
        %s197 = scalar_lea.sflag [#allocation6], %s196
        %s198 = sand.u32 %s77, 1
        %s199 = smul.addr %s198, 2
        %s200 = scalar_lea.vmem [#allocation5], %s199
        // Predicated region
        $region33: #{tpu_custom_call.1} parent=27 // pred_check
          %p201 = pneg %p90
        $region34: #{tpu_custom_call.1} parent=27 // pred_check_branch
          %203 = sbr.rel (%p201) target = $region36
        $region35: #{tpu_custom_call.1} parent=27 // pred_region
          %205 = dma.done %s197, 32
        $region36: #{tpu_custom_call.1} parent=27 // pred_fallthru
          _
        %s206 = sand.u32 %s45, 1
        %s207 = scalar_lea.sflag [#allocation4], %s206
        %s208 = sand.u32 %s45, 1
        %s209 = smul.addr %s208, 2
        %s210 = scalar_lea.vmem [#allocation3], %s209
        %p211 = pneg %p58
        %p212 = pneg %p55
        %s213 = sand.u32 %s77, 1
        %s214 = scalar_lea.sflag [#allocation6], %s213
        %s215 = sand.u32 %s77, 1
        %s216 = smul.addr %s215, 2
        %s217 = scalar_lea.vmem [#allocation5], %s216
        %p218 = pneg %p90
        %p219 = pneg %p87
        %p220 = pneg %p116
        %p221 = pneg %p113
        %p222 = scmp.lt.s32.totalorder %s23, 1
        %s223 = scalar_select %p222, %s23, 1
        %s224 = scalar_lea.vmem %s2, %s223
        %s225 = sadd.s32 %s23, %s24
        %p226 = scmp.lt.s32.totalorder %s225, 0
        %s227 = scalar_select %p226, %s225, 0
        %s228 = sadd.s32 %s23, %s24
        %p229 = scmp.lt.s32.totalorder %s228, 0
        %s230 = scalar_select %p229, %s228, 0
        %p231 = scmp.lt.s32.totalorder %s23, 1
        %s232 = scalar_select %p231, %s23, 1
        %s233 = scalar_lea.vmem %s2, %s232
        %p234 = scmp.eq.s32.totalorder %s24, 0
        // Predicated region
        $region37: #{tpu_custom_call.1} parent=27 // pred_check
          %p235 = pneg %p234
        $region38: #{tpu_custom_call.1} parent=27 // pred_check_branch
          %237 = sbr.rel (%p235) target = $region40
        $region39: #{tpu_custom_call.1} parent=27 // pred_region
          %vm238 = vcmask 0
          %239 = vst.msk [vmem:[#allocation2] sm:$0x1] %vm238, 0.0
        $region40: #{tpu_custom_call.1} parent=27 // pred_fallthru
          _
        %v240 = vld [vmem:[%s190] sm:$0x3]
        %v241 = vld [vmem:[%s200] sm:$0x3]
        %v242 = vsub.f32 %v240, %v241
        %v243 = vadd.f32 %v242, 1e-06
        %v244 = vmul.f32 %v243, %v243
        %s245 = sadd.s32 %s23, %s24
        %s246 = smul.u32 %s245, 2
        %v247 = vlaneseq
        %v248 = vshrl.u32 %v247, 7
        %v249 = vstv %s246
        %v250 = vadd.s32 %v249, %v248
        %vm251 = vcmp.lt.s32.totalorder %v250, 2
        %v252 = vsel %vm251, %v244, 0.0
        %v253 = vld [vmem:[#allocation2] sm:$0x1]
        %vm254 = vcmask 1041408
        %v255 = vsel %vm254, %v252, 0.0
        %256 = vadd.xlane.f32.xlu0 %v255
        %v257 = vpop.xlane.xlu0 %256
        %v258 = vrot.slane %v257, 4
        %v259 = vadd.f32 %v257, %v258
        %v260 = vrot.slane %v259, 2
        %v261 = vadd.f32 %v259, %v260
        %v262 = vrot.slane %v261, 1
        %v263 = vadd.f32 %v261, %v262
        %s264 = vtos %v263
        %v265 = vstv %s264
        %v266 = vadd.f32 %v253, %v265
        %vm267 = vcmask 0
        %268 = vst.msk [vmem:[#allocation2] sm:$0x1] %vm267, %v266
        // Predicated region
        $region41: #{tpu_custom_call.1} parent=27 // pred_check
          %p269 = pneg %p234
        $region42: #{tpu_custom_call.1} parent=27 // pred_check_branch
          %271 = sbr.rel (%p269) target = $region44
        $region43: #{tpu_custom_call.1} parent=27 // pred_region
          %v272 = vld [vmem:[#allocation2] sm:$0x1]
          %273 = vst.msk [vmem:[%s233] sm:$0x1] %vm267, %v272
        $region44: #{tpu_custom_call.1} parent=27 // pred_fallthru
          _
        %p274 = scmp.lt.s32.totalorder %s23, 1
        %s275 = scalar_select %p274, %s23, 1
        %s276 = scalar_lea.vmem %s2, %s275
        // Predicated region
        $region45: #{tpu_custom_call.1} parent=27 // pred_check
          %p277 = pneg %p113
        $region46: #{tpu_custom_call.1} parent=27 // pred_check_branch
          %279 = sbr.rel (%p277) target = $region48
        $region47: #{tpu_custom_call.1} parent=27 // pred_region
          _
        $region48: #{tpu_custom_call.1} parent=27 // pred_fallthru
          _
      $region28: #{tpu_custom_call.1} parent=5 // pred_fallthru
        _
      %p280 = scmp.le.s32.totalorder 2, %s14
      // Predicated region
      $region49: #{tpu_custom_call.1} parent=5 // pred_check
        %p281 = pneg %p280
      $region50: #{tpu_custom_call.1} parent=5 // pred_check_branch
        %283 = sbr.rel (%p281) target = $region52
      $region51: #{tpu_custom_call.1} parent=5 // pred_region
        %s284 = ssub.s32 %s14, 2
        // Predicated region
        $region53: #{tpu_custom_call.1} parent=51 // pred_check
          %p285 = pneg %p119
        $region54: #{tpu_custom_call.1} parent=51 // pred_check_branch
          %287 = sbr.rel (%p285) target = $region56
        $region55: #{tpu_custom_call.1} parent=51 // pred_region
          %p288 = scmp.lt.s32.totalorder %s25, 1
          %s289 = scalar_select %p288, %s25, 1
          %s290 = scalar_lea.vmem %s2, %s289
        $region56: #{tpu_custom_call.1} parent=51 // pred_fallthru
          _
      $region52: #{tpu_custom_call.1} parent=5 // pred_fallthru
        _
    $region6: #{tpu_custom_call.1} parent=1 // loop_footer
      %s18 = sadd.s32 1, %s14
    $region7: #{tpu_custom_call.1} parent=1 // loop_footer_branch
      %13 = sbr.rel target = $region3
    $region8: #{tpu_custom_call.1} parent=1 // loop_exit
      _
    %291 = vsyncpa [#allocation4], 1
    %s292 = scalar_lea.sflag [#allocation4], 1
    %293 = vsyncpa %s292, 1
    %294 = vsyncpa [#allocation6], 1
    %s295 = scalar_lea.sflag [#allocation6], 1
    %296 = vsyncpa %s295, 1

</llo_original>
